<compile_context>
chip_gen: v7x
topology: tpu7x:2x2x1
jax: 0.10.0
libtpu: 0.0.40
codegen_flags: <defaults>
</compile_context>

<pallas_src>
import functools

import jax
import jax.numpy as jnp
from jax.experimental import pallas as pl
from jax.experimental.pallas import tpu as pltpu


def _round_up(x, m):
    return (x + m - 1) // m * m


# ---------------------------------------------------------------------------
# Pallas kernel: one (tm, K) x (K, Np) matmul per M tile, fused bias add,
# output stored directly in the final dtype.
# ---------------------------------------------------------------------------
def _patch_embed_matmul_kernel(p_ref, w_ref, b_ref, o_ref):
    acc = jnp.dot(p_ref[...], w_ref[...], preferred_element_type=jnp.float32)
    o_ref[...] = (acc + b_ref[...]).astype(o_ref.dtype)


def _patch_embed_matmul(patches, weight, bias, *, tm, out_dtype):
    """patches: (M, K)  weight: (K, Np)  bias: (1, Np)  ->  (M, Np) out_dtype."""
    M, K = patches.shape
    _, Np = weight.shape
    grid_m = pl.cdiv(M, tm)          # partial last M block is masked by Pallas

    in_itemsize = jnp.dtype(patches.dtype).itemsize
    w_itemsize = jnp.dtype(weight.dtype).itemsize
    out_itemsize = jnp.dtype(out_dtype).itemsize
    # Double-buffered patches/output tiles + resident weight/bias blocks, with
    # 2x headroom for Mosaic scratch; capped at 32 MiB (v7x has 64 MiB VMEM/TC).
    tile_bytes = (2 * tm * K * in_itemsize        # patches tile (double-buffered)
                  + 2 * K * Np * w_itemsize       # weight (constant block)
                  + 2 * Np * 4                    # bias
                  + 2 * tm * Np * out_itemsize)   # output tile (double-buffered)
    vmem_limit = int(min(max(2 * tile_bytes, 16 << 20), 32 << 20))

    return pl.pallas_call(
        _patch_embed_matmul_kernel,
        out_shape=jax.ShapeDtypeStruct((M, Np), out_dtype),
        grid_spec=pltpu.PrefetchScalarGridSpec(
            num_scalar_prefetch=0,
            grid=(grid_m,),
            in_specs=[
                pl.BlockSpec((tm, K), lambda i: (i, 0)),
                pl.BlockSpec((K, Np), lambda i: (0, 0)),
                pl.BlockSpec((1, Np), lambda i: (0, 0)),
            ],
            out_specs=pl.BlockSpec((tm, Np), lambda i: (i, 0)),
        ),
        compiler_params=pltpu.CompilerParams(
            dimension_semantics=("parallel",),
            vmem_limit_bytes=vmem_limit,
        ),
    )(patches, weight, bias)


# ---------------------------------------------------------------------------
# PatchEmbed forward (Conv3d path, conv_2d=False).
# ---------------------------------------------------------------------------
def patch_embed_forward(x, weight, bias, *, stride, padding,
                        tm=1024, compute_dtype=jnp.bfloat16, out_dtype=None):
    """
    x:      (B, Cin, T, H, W)           -- NCTHW, matches PyTorch Conv3d input
    weight: (Cout, Cin, Kt, Kh, Kw)     -- PyTorch Conv3d weight layout
    bias:   (Cout,)
    returns (B, To*Ho*Wo, Cout)         -- == proj(x).flatten(2).transpose(1,2)
    """
    B, C, T, H, W = x.shape
    Cout, Cin, Kt, Kh, Kw = weight.shape
    assert C == Cin
    pt, ph, pw = padding
    if out_dtype is None:
        out_dtype = x.dtype

    # Cast BEFORE im2col: the patches tensor is ~(Kh*Kw)/(sh*sw) times larger
    # than x, so producing it directly in bf16 halves its HBM write and removes
    # a separate full-pass cast over the inflated array.
    xc = x.astype(compute_dtype)

    # Window extraction via strided slices (no gather / big transpose).
    # Output: (B, To, Ho, Wo, C*Kt*Kh*Kw), feature axis ordered (C, Kt, Kh, Kw),
    # exactly matching weight.reshape(Cout, C*Kt*Kh*Kw).
    patches = jax.lax.conv_general_dilated_patches(
        xc,
        filter_shape=(Kt, Kh, Kw),
        window_strides=stride,
        padding=[(pt, pt), (ph, ph), (pw, pw)],
        dimension_numbers=("NCDHW", "OIDHW", "NDHWC"),
    )
    _, To, Ho, Wo, K = patches.shape
    M = B * To * Ho * Wo
    patches = patches.reshape(M, K)   # rows ordered (b, t, h, w); contiguous, no copy

    # Cout padded to a lane multiple so output stores are unmasked (lane-dense);
    # weight/bias pads are tiny.  K needs no pad: its block spans the full dim.
    Np = _round_up(Cout, 128)

    # Row tile: big (amortize per-step overhead, long DMA bursts), but keep at
    # least 2 grid steps when M allows so both v7x TensorCores get work.
    tm = min(tm, _round_up(M, 128))
    if M > 256:
        tm = min(tm, _round_up(pl.cdiv(M, 2), 128))

    w_mat = weight.reshape(Cout, K).T.astype(compute_dtype)      # (K, Cout)
    b_mat = bias.reshape(1, Cout).astype(jnp.float32)
    if Np != Cout:
        w_mat = jnp.pad(w_mat, ((0, 0), (0, Np - Cout)))
        b_mat = jnp.pad(b_mat, ((0, 0), (0, Np - Cout)))

    out = _patch_embed_matmul(patches, w_mat, b_mat, tm=tm, out_dtype=out_dtype)
    if Np != Cout:
        out = out[:, :Cout]           # no-op when Cout is already 128-aligned

    # (B, To*Ho*Wo, Cout)  ==  conv(x).flatten(2).transpose(1, 2)
    return out.reshape(B, To * Ho * Wo, Cout)


# ---------------------------------------------------------------------------
# Main: deterministic params / input, run once, check vs lax.conv reference.
# ---------------------------------------------------------------------------
if __name__ == "__main__":
    # Small shapes consistent with the module (Conv3d path, default hyperparams).
    dim_in, dim_out = 3, 32
    kernel = (1, 16, 16)
    stride = (1, 4, 4)
    padding = (1, 7, 7)
    B, T, H, W = 2, 2, 16, 16

    key = jax.random.PRNGKey(0)
    kx, kw, kb = jax.random.split(key, 3)
    x = jax.random.normal(kx, (B, dim_in, T, H, W), dtype=jnp.float32)
    # trunc_normal_(std=0.02)-style deterministic init (plain normal, synthetic).
    weight = 0.02 * jax.random.normal(
        kw, (dim_out, dim_in) + kernel, dtype=jnp.float32
    )
    bias = 0.01 * jax.random.normal(kb, (dim_out,), dtype=jnp.float32)

    fwd = jax.jit(
        functools.partial(patch_embed_forward, stride=stride, padding=padding)
    )
    out = fwd(x, weight, bias)
    jax.block_until_ready(out)

    # Pure-JAX f32 reference (Conv3d + flatten(2).transpose(1,2)).
    conv = jax.lax.conv_general_dilated(
        x, weight,
        window_strides=stride,
        padding=[(padding[0], padding[0]),
                 (padding[1], padding[1]),
                 (padding[2], padding[2])],
        dimension_numbers=("NCDHW", "OIDHW", "NCDHW"),
        precision=jax.lax.Precision.HIGHEST,
    ) + bias[None, :, None, None, None]
    ref = jnp.transpose(conv.reshape(conv.shape[0], conv.shape[1], -1), (0, 2, 1))

    assert out.shape == ref.shape, (out.shape, ref.shape)
    # bf16 matmul inputs with f32 accumulation: tolerance sized for bf16 rounding,
    # still far tighter than any real indexing/ordering bug would produce.
    assert jnp.allclose(out, ref, atol=2e-2, rtol=2e-2), float(
        jnp.max(jnp.abs(out - ref))
    )
    print("KERNEL_OK")
</pallas_src>

<mosaic_0001>
module attributes {stable_mosaic.version = 11 : i64} {
  func.func @_patch_embed_matmul_kernel(%arg0: i32, %arg1: memref<128x768xbf16, #tpu.memory_space<vmem>>, %arg2: memref<768x128xbf16, #tpu.memory_space<vmem>>, %arg3: memref<1x128xf32, #tpu.memory_space<vmem>>, %arg4: memref<128x128xf32, #tpu.memory_space<vmem>>) attributes {dimension_semantics = [#tpu.dimension_semantics<parallel>], iteration_bounds = array<i64: 1>, scalar_prefetch = 0 : i64, scratch_operands = 0 : i64, tpu.core_type = #tpu.core_type<tc>, window_params = [{transform_indices = @transform_0, window_bounds = array<i64: 128, 768>}, {pipeline_mode = #tpu.pipeline_mode<synchronous>, transform_indices = @transform_1, window_bounds = array<i64: 768, 128>}, {pipeline_mode = #tpu.pipeline_mode<synchronous>, transform_indices = @transform_2, window_bounds = array<i64: 1, 128>}, {transform_indices = @transform_3, window_bounds = array<i64: 128, 128>}]} {
    %c0 = arith.constant 0 : index
    %c0_0 = arith.constant 0 : index
    %0 = vector.load %arg1[%c0, %c0_0] : memref<128x768xbf16, #tpu.memory_space<vmem>>, vector<128x768xbf16>
    %c0_1 = arith.constant 0 : index
    %c0_2 = arith.constant 0 : index
    %1 = vector.load %arg2[%c0_1, %c0_2] : memref<768x128xbf16, #tpu.memory_space<vmem>>, vector<768x128xbf16>
    %cst = arith.constant dense<0.000000e+00> : vector<128x128xf32>
    %2 = tpu.matmul %0, %1, %cst {dimension_numbers = #tpu.dot_dimension_numbers<[1], [0], [0], [1], [0, 0, 1, 1], [], []>} : vector<128x768xbf16>, vector<768x128xbf16>, vector<128x128xf32> -> vector<128x128xf32>
    %c0_3 = arith.constant 0 : index
    %c0_4 = arith.constant 0 : index
    %3 = vector.load %arg3[%c0_3, %c0_4] : memref<1x128xf32, #tpu.memory_space<vmem>>, vector<1x128xf32>
    %4 = vector.broadcast %3 : vector<1x128xf32> to vector<128x128xf32>
    %5 = arith.addf %2, %4 : vector<128x128xf32>
    %c0_5 = arith.constant 0 : index
    %c0_6 = arith.constant 0 : index
    %6 = vector.load %arg4[%c0_5, %c0_6] : memref<128x128xf32, #tpu.memory_space<vmem>>, vector<128x128xf32>
    tpu.vector_store %arg4[%c0_5, %c0_6], %5 {strides = array<i32>} : memref<128x128xf32, #tpu.memory_space<vmem>>, vector<128x128xf32>,
    return
  }
  func.func @transform_0(%arg0: i32) -> (i32, i32) {
    %c0_i32 = arith.constant 0 : i32
    %c0_i32_0 = arith.constant 0 : i32
    return %arg0, %c0_i32 : i32, i32
  }
  func.func @transform_1(%arg0: i32) -> (i32, i32) {
    %c0_i32 = arith.constant 0 : i32
    %c0_i32_0 = arith.constant 0 : i32
    %c0_i32_1 = arith.constant 0 : i32
    return %c0_i32, %c0_i32_0 : i32, i32
  }
  func.func @transform_2(%arg0: i32) -> (i32, i32) {
    %c0_i32 = arith.constant 0 : i32
    %c0_i32_0 = arith.constant 0 : i32
    %c0_i32_1 = arith.constant 0 : i32
    return %c0_i32, %c0_i32_0 : i32, i32
  }
  func.func @transform_3(%arg0: i32) -> (i32, i32) {
    %c0_i32 = arith.constant 0 : i32
    %c0_i32_0 = arith.constant 0 : i32
    return %arg0, %c0_i32 : i32, i32
  }
}

</mosaic_0001>

<llo_original>
// kernel: patch_embed_forward.1
$region0: #{patch_embed_forward.1}
  #allocation0 [shape = 'u32[]', space=smem, size = 0x4, offset = 0x4, fixed_abs, tag = 'smem constant byte address 0x4 - core index']
  #allocation1 [shape = 'u32[144,128]{1,0:T(1,128)}', space=vmem, size = 0x12000, scoped, tag = 'internal scratch']
  %s0 = inlined_call_operand.vmem [shape: bf16[128,768], index: 0, kind: input, shape index: {}]
  %s1 = inlined_call_operand.vmem [shape: bf16[768,128], index: 1, kind: input, shape index: {}]
  %s2 = inlined_call_operand.vmem [shape: f32[1,128], index: 2, kind: input, shape index: {}]
  %s3 = inlined_call_operand.vmem [shape: f32[128,128], index: 3, kind: output, shape index: {}]
  %s4 = sld [smem:[#allocation0]]
  $region22: #{patch_embed_forward.1} parent=0
    _
  %s6 = ssub.s32 1, %s4
  %s7 = scalar_select 0, %s6, %s4
  // Predicated region
  $region2: #{patch_embed_forward.1} parent=0 // pred_check
    _
  $region3: #{patch_embed_forward.1} parent=0 // pred_check_branch
    %9 = sbr.rel (0) target = $region5
  $region4: #{patch_embed_forward.1} parent=0 // pred_region
    _
  $region5: #{patch_embed_forward.1} parent=0 // pred_fallthru
    _
  // Predicated region
  $region6: #{patch_embed_forward.1} parent=0 // pred_check
    _
  $region7: #{patch_embed_forward.1} parent=0 // pred_check_branch
    %11 = sbr.rel (0) target = $region9
  $region8: #{patch_embed_forward.1} parent=0 // pred_region
    _
  $region9: #{patch_embed_forward.1} parent=0 // pred_fallthru
    _
  // Predicated region
  $region10: #{patch_embed_forward.1} parent=0 // pred_check
    _
  $region11: #{patch_embed_forward.1} parent=0 // pred_check_branch
    %13 = sbr.rel (0) target = $region13
  $region12: #{patch_embed_forward.1} parent=0 // pred_region
    _
  $region13: #{patch_embed_forward.1} parent=0 // pred_fallthru
    _
  %v15 = vld [vmem:[%s0] sm:$0xff]
  %v16 = vld [vmem:[%s0 + $0x8] sm:$0xff]
  %v17 = vld [vmem:[%s0 + $0x10] sm:$0xff]
  %v18 = vld [vmem:[%s0 + $0x18] sm:$0xff]
  %v19 = vld [vmem:[%s0 + $0x20] sm:$0xff]
  %v20 = vld [vmem:[%s0 + $0x28] sm:$0xff]
  %v21 = vld [vmem:[%s0 + $0x30] sm:$0xff]
  %v22 = vld [vmem:[%s0 + $0x38] sm:$0xff]
  %v23 = vld [vmem:[%s0 + $0x40] sm:$0xff]
  %v24 = vld [vmem:[%s0 + $0x48] sm:$0xff]
  %v25 = vld [vmem:[%s0 + $0x50] sm:$0xff]
  %v26 = vld [vmem:[%s0 + $0x58] sm:$0xff]
  %v27 = vld [vmem:[%s0 + $0x60] sm:$0xff]
  %v28 = vld [vmem:[%s0 + $0x68] sm:$0xff]
  %v29 = vld [vmem:[%s0 + $0x70] sm:$0xff]
  %v30 = vld [vmem:[%s0 + $0x78] sm:$0xff]
  %v31 = vld [vmem:[%s0 + $0x80] sm:$0xff]
  %v32 = vld [vmem:[%s0 + $0x88] sm:$0xff]
  %v33 = vld [vmem:[%s0 + $0x90] sm:$0xff]
  %v34 = vld [vmem:[%s0 + $0x98] sm:$0xff]
  %v35 = vld [vmem:[%s0 + $0xa0] sm:$0xff]
  %v36 = vld [vmem:[%s0 + $0xa8] sm:$0xff]
  %v37 = vld [vmem:[%s0 + $0xb0] sm:$0xff]
  %v38 = vld [vmem:[%s0 + $0xb8] sm:$0xff]
  %v39 = vld [vmem:[%s0 + $0xc0] sm:$0xff]
  %v40 = vld [vmem:[%s0 + $0xc8] sm:$0xff]
  %v41 = vld [vmem:[%s0 + $0xd0] sm:$0xff]
  %v42 = vld [vmem:[%s0 + $0xd8] sm:$0xff]
  %v43 = vld [vmem:[%s0 + $0xe0] sm:$0xff]
  %v44 = vld [vmem:[%s0 + $0xe8] sm:$0xff]
  %v45 = vld [vmem:[%s0 + $0xf0] sm:$0xff]
  %v46 = vld [vmem:[%s0 + $0xf8] sm:$0xff]
  %v47 = vld [vmem:[%s0 + $0x100] sm:$0xff]
  %v48 = vld [vmem:[%s0 + $0x108] sm:$0xff]
  %v49 = vld [vmem:[%s0 + $0x110] sm:$0xff]
  %v50 = vld [vmem:[%s0 + $0x118] sm:$0xff]
  %v51 = vld [vmem:[%s0 + $0x120] sm:$0xff]
  %v52 = vld [vmem:[%s0 + $0x128] sm:$0xff]
  %v53 = vld [vmem:[%s0 + $0x130] sm:$0xff]
  %v54 = vld [vmem:[%s0 + $0x138] sm:$0xff]
  %v55 = vld [vmem:[%s0 + $0x140] sm:$0xff]
  %v56 = vld [vmem:[%s0 + $0x148] sm:$0xff]
  %v57 = vld [vmem:[%s0 + $0x150] sm:$0xff]
  %v58 = vld [vmem:[%s0 + $0x158] sm:$0xff]
  %v59 = vld [vmem:[%s0 + $0x160] sm:$0xff]
  %v60 = vld [vmem:[%s0 + $0x168] sm:$0xff]
  %v61 = vld [vmem:[%s0 + $0x170] sm:$0xff]
  %v62 = vld [vmem:[%s0 + $0x178] sm:$0xff]
  %v63 = vld [vmem:[%s1] sm:$0xf]
  %v64 = vld [vmem:[%s1 + $0x4] sm:$0xf]
  %v65 = vld [vmem:[%s1 + $0x8] sm:$0xf]
  %v66 = vld [vmem:[%s1 + $0xc] sm:$0xf]
  %v67 = vld [vmem:[%s1 + $0x10] sm:$0xf]
  %v68 = vld [vmem:[%s1 + $0x14] sm:$0xf]
  %v69 = vld [vmem:[%s1 + $0x18] sm:$0xf]
  %v70 = vld [vmem:[%s1 + $0x1c] sm:$0xf]
  %v71 = vld [vmem:[%s1 + $0x20] sm:$0xf]
  %v72 = vld [vmem:[%s1 + $0x24] sm:$0xf]
  %v73 = vld [vmem:[%s1 + $0x28] sm:$0xf]
  %v74 = vld [vmem:[%s1 + $0x2c] sm:$0xf]
  %v75 = vld [vmem:[%s1 + $0x30] sm:$0xf]
  %v76 = vld [vmem:[%s1 + $0x34] sm:$0xf]
  %v77 = vld [vmem:[%s1 + $0x38] sm:$0xf]
  %v78 = vld [vmem:[%s1 + $0x3c] sm:$0xf]
  %v79 = vld [vmem:[%s1 + $0x40] sm:$0xf]
  %v80 = vld [vmem:[%s1 + $0x44] sm:$0xf]
  %v81 = vld [vmem:[%s1 + $0x48] sm:$0xf]
  %v82 = vld [vmem:[%s1 + $0x4c] sm:$0xf]
  %v83 = vld [vmem:[%s1 + $0x50] sm:$0xf]
  %v84 = vld [vmem:[%s1 + $0x54] sm:$0xf]
  %v85 = vld [vmem:[%s1 + $0x58] sm:$0xf]
  %v86 = vld [vmem:[%s1 + $0x5c] sm:$0xf]
  %v87 = vld [vmem:[%s1 + $0x60] sm:$0xf]
  %v88 = vld [vmem:[%s1 + $0x64] sm:$0xf]
  %v89 = vld [vmem:[%s1 + $0x68] sm:$0xf]
  %v90 = vld [vmem:[%s1 + $0x6c] sm:$0xf]
  %v91 = vld [vmem:[%s1 + $0x70] sm:$0xf]
  %v92 = vld [vmem:[%s1 + $0x74] sm:$0xf]
  %v93 = vld [vmem:[%s1 + $0x78] sm:$0xf]
  %v94 = vld [vmem:[%s1 + $0x7c] sm:$0xf]
  %v95 = vld [vmem:[%s1 + $0x80] sm:$0xf]
  %v96 = vld [vmem:[%s1 + $0x84] sm:$0xf]
  %v97 = vld [vmem:[%s1 + $0x88] sm:$0xf]
  %v98 = vld [vmem:[%s1 + $0x8c] sm:$0xf]
  %v99 = vld [vmem:[%s1 + $0x90] sm:$0xf]
  %v100 = vld [vmem:[%s1 + $0x94] sm:$0xf]
  %v101 = vld [vmem:[%s1 + $0x98] sm:$0xf]
  %v102 = vld [vmem:[%s1 + $0x9c] sm:$0xf]
  %v103 = vld [vmem:[%s1 + $0xa0] sm:$0xf]
  %v104 = vld [vmem:[%s1 + $0xa4] sm:$0xf]
  %v105 = vld [vmem:[%s1 + $0xa8] sm:$0xf]
  %v106 = vld [vmem:[%s1 + $0xac] sm:$0xf]
  %v107 = vld [vmem:[%s1 + $0xb0] sm:$0xf]
  %v108 = vld [vmem:[%s1 + $0xb4] sm:$0xf]
  %v109 = vld [vmem:[%s1 + $0xb8] sm:$0xf]
  %v110 = vld [vmem:[%s1 + $0xbc] sm:$0xf]
  %v111 = vld [vmem:[%s1 + $0xc0] sm:$0xf]
  %v112 = vld [vmem:[%s1 + $0xc4] sm:$0xf]
  %v113 = vld [vmem:[%s1 + $0xc8] sm:$0xf]
  %v114 = vld [vmem:[%s1 + $0xcc] sm:$0xf]
  %v115 = vld [vmem:[%s1 + $0xd0] sm:$0xf]
  %v116 = vld [vmem:[%s1 + $0xd4] sm:$0xf]
  %v117 = vld [vmem:[%s1 + $0xd8] sm:$0xf]
  %v118 = vld [vmem:[%s1 + $0xdc] sm:$0xf]
  %v119 = vld [vmem:[%s1 + $0xe0] sm:$0xf]
  %v120 = vld [vmem:[%s1 + $0xe4] sm:$0xf]
  %v121 = vld [vmem:[%s1 + $0xe8] sm:$0xf]
  %v122 = vld [vmem:[%s1 + $0xec] sm:$0xf]
  %v123 = vld [vmem:[%s1 + $0xf0] sm:$0xf]
  %v124 = vld [vmem:[%s1 + $0xf4] sm:$0xf]
  %v125 = vld [vmem:[%s1 + $0xf8] sm:$0xf]
  %v126 = vld [vmem:[%s1 + $0xfc] sm:$0xf]
  %v127 = vld [vmem:[%s1 + $0x100] sm:$0xf]
  %v128 = vld [vmem:[%s1 + $0x104] sm:$0xf]
  %v129 = vld [vmem:[%s1 + $0x108] sm:$0xf]
  %v130 = vld [vmem:[%s1 + $0x10c] sm:$0xf]
  %v131 = vld [vmem:[%s1 + $0x110] sm:$0xf]
  %v132 = vld [vmem:[%s1 + $0x114] sm:$0xf]
  %v133 = vld [vmem:[%s1 + $0x118] sm:$0xf]
  %v134 = vld [vmem:[%s1 + $0x11c] sm:$0xf]
  %v135 = vld [vmem:[%s1 + $0x120] sm:$0xf]
  %v136 = vld [vmem:[%s1 + $0x124] sm:$0xf]
  %v137 = vld [vmem:[%s1 + $0x128] sm:$0xf]
  %v138 = vld [vmem:[%s1 + $0x12c] sm:$0xf]
  %v139 = vld [vmem:[%s1 + $0x130] sm:$0xf]
  %v140 = vld [vmem:[%s1 + $0x134] sm:$0xf]
  %v141 = vld [vmem:[%s1 + $0x138] sm:$0xf]
  %v142 = vld [vmem:[%s1 + $0x13c] sm:$0xf]
  %v143 = vld [vmem:[%s1 + $0x140] sm:$0xf]
  %v144 = vld [vmem:[%s1 + $0x144] sm:$0xf]
  %v145 = vld [vmem:[%s1 + $0x148] sm:$0xf]
  %v146 = vld [vmem:[%s1 + $0x14c] sm:$0xf]
  %v147 = vld [vmem:[%s1 + $0x150] sm:$0xf]
  %v148 = vld [vmem:[%s1 + $0x154] sm:$0xf]
  %v149 = vld [vmem:[%s1 + $0x158] sm:$0xf]
  %v150 = vld [vmem:[%s1 + $0x15c] sm:$0xf]
  %v151 = vld [vmem:[%s1 + $0x160] sm:$0xf]
  %v152 = vld [vmem:[%s1 + $0x164] sm:$0xf]
  %v153 = vld [vmem:[%s1 + $0x168] sm:$0xf]
  %v154 = vld [vmem:[%s1 + $0x16c] sm:$0xf]
  %v155 = vld [vmem:[%s1 + $0x170] sm:$0xf]
  %v156 = vld [vmem:[%s1 + $0x174] sm:$0xf]
  %v157 = vld [vmem:[%s1 + $0x178] sm:$0xf]
  %v158 = vld [vmem:[%s1 + $0x17c] sm:$0xf]
  %v159 = vld [vmem:[%s2] sm:$0x1]
  %v161 = vlaneseq
  %v162 = vshrl.u32 %v161, 7
  %v163 = vsub.s32 0, %v162
  %v164 = vrot.slane %v159, %v163
  %v214 = vunpack.c.l.b16 %v15
  %v215 = vunpack.c.h.b16 %v15
  %v216 = vunpack.c.l.b16 %v16
  %v217 = vunpack.c.h.b16 %v16
  %v218 = vunpack.c.l.b16 %v17
  %v219 = vunpack.c.h.b16 %v17
  %v220 = vunpack.c.l.b16 %v18
  %v221 = vunpack.c.h.b16 %v18
  %v222 = vunpack.c.l.b16 %v19
  %v223 = vunpack.c.h.b16 %v19
  %v224 = vunpack.c.l.b16 %v20
  %v225 = vunpack.c.h.b16 %v20
  %v226 = vunpack.c.l.b16 %v21
  %v227 = vunpack.c.h.b16 %v21
  %v228 = vunpack.c.l.b16 %v22
  %v229 = vunpack.c.h.b16 %v22
  %v230 = vunpack.c.l.b16 %v23
  %v231 = vunpack.c.h.b16 %v23
  %v232 = vunpack.c.l.b16 %v24
  %v233 = vunpack.c.h.b16 %v24
  %v234 = vunpack.c.l.b16 %v25
  %v235 = vunpack.c.h.b16 %v25
  %v236 = vunpack.c.l.b16 %v26
  %v237 = vunpack.c.h.b16 %v26
  %v238 = vunpack.c.l.b16 %v27
  %v239 = vunpack.c.h.b16 %v27
  %v240 = vunpack.c.l.b16 %v28
  %v241 = vunpack.c.h.b16 %v28
  %v242 = vunpack.c.l.b16 %v29
  %v243 = vunpack.c.h.b16 %v29
  %v244 = vunpack.c.l.b16 %v30
  %v245 = vunpack.c.h.b16 %v30
  %v246 = vunpack.c.l.b16 %v31
  %v247 = vunpack.c.h.b16 %v31
  %v248 = vunpack.c.l.b16 %v32
  %v249 = vunpack.c.h.b16 %v32
  %v250 = vunpack.c.l.b16 %v33
  %v251 = vunpack.c.h.b16 %v33
  %v252 = vunpack.c.l.b16 %v34
  %v253 = vunpack.c.h.b16 %v34
  %v254 = vunpack.c.l.b16 %v35
  %v255 = vunpack.c.h.b16 %v35
  %v256 = vunpack.c.l.b16 %v36
  %v257 = vunpack.c.h.b16 %v36
  %v258 = vunpack.c.l.b16 %v37
  %v259 = vunpack.c.h.b16 %v37
  %v260 = vunpack.c.l.b16 %v38
  %v261 = vunpack.c.h.b16 %v38
  %v262 = vunpack.c.l.b16 %v39
  %v263 = vunpack.c.h.b16 %v39
  %v264 = vunpack.c.l.b16 %v40
  %v265 = vunpack.c.h.b16 %v40
  %v266 = vunpack.c.l.b16 %v41
  %v267 = vunpack.c.h.b16 %v41
  %v268 = vunpack.c.l.b16 %v42
  %v269 = vunpack.c.h.b16 %v42
  %v270 = vunpack.c.l.b16 %v43
  %v271 = vunpack.c.h.b16 %v43
  %v272 = vunpack.c.l.b16 %v44
  %v273 = vunpack.c.h.b16 %v44
  %v274 = vunpack.c.l.b16 %v45
  %v275 = vunpack.c.h.b16 %v45
  %v276 = vunpack.c.l.b16 %v46
  %v277 = vunpack.c.h.b16 %v46
  %v278 = vunpack.c.l.b16 %v47
  %v279 = vunpack.c.h.b16 %v47
  %v280 = vunpack.c.l.b16 %v48
  %v281 = vunpack.c.h.b16 %v48
  %v282 = vunpack.c.l.b16 %v49
  %v283 = vunpack.c.h.b16 %v49
  %v284 = vunpack.c.l.b16 %v50
  %v285 = vunpack.c.h.b16 %v50
  %v286 = vunpack.c.l.b16 %v51
  %v287 = vunpack.c.h.b16 %v51
  %v288 = vunpack.c.l.b16 %v52
  %v289 = vunpack.c.h.b16 %v52
  %v290 = vunpack.c.l.b16 %v53
  %v291 = vunpack.c.h.b16 %v53
  %v292 = vunpack.c.l.b16 %v54
  %v293 = vunpack.c.h.b16 %v54
  %v294 = vunpack.c.l.b16 %v55
  %v295 = vunpack.c.h.b16 %v55
  %v296 = vunpack.c.l.b16 %v56
  %v297 = vunpack.c.h.b16 %v56
  %v298 = vunpack.c.l.b16 %v57
  %v299 = vunpack.c.h.b16 %v57
  %v300 = vunpack.c.l.b16 %v58
  %v301 = vunpack.c.h.b16 %v58
  %v302 = vunpack.c.l.b16 %v59
  %v303 = vunpack.c.h.b16 %v59
  %v304 = vunpack.c.l.b16 %v60
  %v305 = vunpack.c.h.b16 %v60
  %v306 = vunpack.c.l.b16 %v61
  %v307 = vunpack.c.h.b16 %v61
  %v308 = vunpack.c.l.b16 %v62
  %v309 = vunpack.c.h.b16 %v62
  %v310 = vpack.c.b16 %v220, %v214
  %v311 = vpack.c.b16 %v221, %v215
  %v312 = vpack.c.b16 %v222, %v216
  %v313 = vpack.c.b16 %v223, %v217
  %v314 = vpack.c.b16 %v224, %v218
  %v315 = vpack.c.b16 %v225, %v219
  %v316 = vpack.c.b16 %v232, %v226
  %v317 = vpack.c.b16 %v233, %v227
  %v318 = vpack.c.b16 %v234, %v228
  %v319 = vpack.c.b16 %v235, %v229
  %v320 = vpack.c.b16 %v236, %v230
  %v321 = vpack.c.b16 %v237, %v231
  %v322 = vpack.c.b16 %v244, %v238
  %v323 = vpack.c.b16 %v245, %v239
  %v324 = vpack.c.b16 %v246, %v240
  %v325 = vpack.c.b16 %v247, %v241
  %v326 = vpack.c.b16 %v248, %v242
  %v327 = vpack.c.b16 %v249, %v243
  %v328 = vpack.c.b16 %v256, %v250
  %v329 = vpack.c.b16 %v257, %v251
  %v330 = vpack.c.b16 %v258, %v252
  %v331 = vpack.c.b16 %v259, %v253
  %v332 = vpack.c.b16 %v260, %v254
  %v333 = vpack.c.b16 %v261, %v255
  %v334 = vpack.c.b16 %v268, %v262
  %v335 = vpack.c.b16 %v269, %v263
  %v336 = vpack.c.b16 %v270, %v264
  %v337 = vpack.c.b16 %v271, %v265
  %v338 = vpack.c.b16 %v272, %v266
  %v339 = vpack.c.b16 %v273, %v267
  %v340 = vpack.c.b16 %v280, %v274
  %v341 = vpack.c.b16 %v281, %v275
  %v342 = vpack.c.b16 %v282, %v276
  %v343 = vpack.c.b16 %v283, %v277
  %v344 = vpack.c.b16 %v284, %v278
  %v345 = vpack.c.b16 %v285, %v279
  %v346 = vpack.c.b16 %v292, %v286
  %v347 = vpack.c.b16 %v293, %v287
  %v348 = vpack.c.b16 %v294, %v288
  %v349 = vpack.c.b16 %v295, %v289
  %v350 = vpack.c.b16 %v296, %v290
  %v351 = vpack.c.b16 %v297, %v291
  %v352 = vpack.c.b16 %v304, %v298
  %v353 = vpack.c.b16 %v305, %v299
  %v354 = vpack.c.b16 %v306, %v300
  %v355 = vpack.c.b16 %v307, %v301
  %v356 = vpack.c.b16 %v308, %v302
  %v357 = vpack.c.b16 %v309, %v303
  %v502 = vunpack.c.l.b16 %v63
  %v503 = vunpack.c.l.b16 %v64
  %v504 = vunpack.c.l.b16 %v65
  %v505 = vunpack.c.l.b16 %v66
  %v506 = vunpack.c.l.b16 %v67
  %v507 = vunpack.c.l.b16 %v68
  %v508 = vunpack.c.l.b16 %v69
  %v509 = vunpack.c.l.b16 %v70
  %v510 = vunpack.c.l.b16 %v71
  %v511 = vunpack.c.l.b16 %v72
  %v512 = vunpack.c.l.b16 %v73
  %v513 = vunpack.c.l.b16 %v74
  %v514 = vunpack.c.l.b16 %v75
  %v515 = vunpack.c.l.b16 %v76
  %v516 = vunpack.c.l.b16 %v77
  %v517 = vunpack.c.l.b16 %v78
  %v518 = vunpack.c.l.b16 %v79
  %v519 = vunpack.c.l.b16 %v80
  %v520 = vunpack.c.l.b16 %v81
  %v521 = vunpack.c.l.b16 %v82
  %v522 = vunpack.c.l.b16 %v83
  %v523 = vunpack.c.l.b16 %v84
  %v524 = vunpack.c.l.b16 %v85
  %v525 = vunpack.c.l.b16 %v86
  %v526 = vunpack.c.l.b16 %v87
  %v527 = vunpack.c.l.b16 %v88
  %v528 = vunpack.c.l.b16 %v89
  %v529 = vunpack.c.l.b16 %v90
  %v530 = vunpack.c.l.b16 %v91
  %v531 = vunpack.c.l.b16 %v92
  %v532 = vunpack.c.l.b16 %v93
  %v533 = vunpack.c.l.b16 %v94
  %v534 = vunpack.c.l.b16 %v95
  %v535 = vunpack.c.l.b16 %v96
  %v536 = vunpack.c.l.b16 %v97
  %v537 = vunpack.c.l.b16 %v98
  %v538 = vunpack.c.l.b16 %v99
  %v539 = vunpack.c.l.b16 %v100
  %v540 = vunpack.c.l.b16 %v101
  %v541 = vunpack.c.l.b16 %v102
  %v542 = vunpack.c.l.b16 %v103
  %v543 = vunpack.c.l.b16 %v104
  %v544 = vunpack.c.l.b16 %v105
  %v545 = vunpack.c.l.b16 %v106
  %v546 = vunpack.c.l.b16 %v107
  %v547 = vunpack.c.l.b16 %v108
  %v548 = vunpack.c.l.b16 %v109
  %v549 = vunpack.c.l.b16 %v110
  %v550 = vunpack.c.l.b16 %v111
  %v551 = vunpack.c.l.b16 %v112
  %v552 = vunpack.c.l.b16 %v113
  %v553 = vunpack.c.l.b16 %v114
  %v554 = vunpack.c.l.b16 %v115
  %v555 = vunpack.c.l.b16 %v116
  %v556 = vunpack.c.l.b16 %v117
  %v557 = vunpack.c.l.b16 %v118
  %v558 = vunpack.c.l.b16 %v119
  %v559 = vunpack.c.l.b16 %v120
  %v560 = vunpack.c.l.b16 %v121
  %v561 = vunpack.c.l.b16 %v122
  %v562 = vunpack.c.l.b16 %v123
  %v563 = vunpack.c.l.b16 %v124
  %v564 = vunpack.c.l.b16 %v125
  %v565 = vunpack.c.l.b16 %v126
  %v566 = vunpack.c.l.b16 %v127
  %v567 = vunpack.c.l.b16 %v128
  %v568 = vunpack.c.l.b16 %v129
  %v569 = vunpack.c.l.b16 %v130
  %v570 = vunpack.c.l.b16 %v131
  %v571 = vunpack.c.l.b16 %v132
  %v572 = vunpack.c.l.b16 %v133
  %v573 = vunpack.c.l.b16 %v134
  %v574 = vunpack.c.l.b16 %v135
  %v575 = vunpack.c.l.b16 %v136
  %v576 = vunpack.c.l.b16 %v137
  %v577 = vunpack.c.l.b16 %v138
  %v578 = vunpack.c.l.b16 %v139
  %v579 = vunpack.c.l.b16 %v140
  %v580 = vunpack.c.l.b16 %v141
  %v581 = vunpack.c.l.b16 %v142
  %v582 = vunpack.c.l.b16 %v143
  %v583 = vunpack.c.l.b16 %v144
  %v584 = vunpack.c.l.b16 %v145
  %v585 = vunpack.c.l.b16 %v146
  %v586 = vunpack.c.l.b16 %v147
  %v587 = vunpack.c.l.b16 %v148
  %v588 = vunpack.c.l.b16 %v149
  %v589 = vunpack.c.l.b16 %v150
  %v590 = vunpack.c.l.b16 %v151
  %v591 = vunpack.c.l.b16 %v152
  %v592 = vunpack.c.l.b16 %v153
  %v593 = vunpack.c.l.b16 %v154
  %v594 = vunpack.c.l.b16 %v155
  %v595 = vunpack.c.l.b16 %v156
  %v596 = vunpack.c.l.b16 %v157
  %v597 = vunpack.c.l.b16 %v158
  %v598 = vpack.c.b16 %v503, %v502
  %v599 = vpack.c.b16 %v505, %v504
  %v600 = vpack.c.b16 %v507, %v506
  %v601 = vpack.c.b16 %v509, %v508
  %v602 = vpack.c.b16 %v511, %v510
  %v603 = vpack.c.b16 %v513, %v512
  %v604 = vpack.c.b16 %v515, %v514
  %v605 = vpack.c.b16 %v517, %v516
  %v606 = vpack.c.b16 %v519, %v518
  %v607 = vpack.c.b16 %v521, %v520
  %v608 = vpack.c.b16 %v523, %v522
  %v609 = vpack.c.b16 %v525, %v524
  %v610 = vpack.c.b16 %v527, %v526
  %v611 = vpack.c.b16 %v529, %v528
  %v612 = vpack.c.b16 %v531, %v530
  %v613 = vpack.c.b16 %v533, %v532
  %v614 = vpack.c.b16 %v535, %v534
  %v615 = vpack.c.b16 %v537, %v536
  %v616 = vpack.c.b16 %v539, %v538
  %v617 = vpack.c.b16 %v541, %v540
  %v618 = vpack.c.b16 %v543, %v542
  %v619 = vpack.c.b16 %v545, %v544
  %v620 = vpack.c.b16 %v547, %v546
  %v621 = vpack.c.b16 %v549, %v548
  %v622 = vpack.c.b16 %v551, %v550
  %v623 = vpack.c.b16 %v553, %v552
  %v624 = vpack.c.b16 %v555, %v554
  %v625 = vpack.c.b16 %v557, %v556
  %v626 = vpack.c.b16 %v559, %v558
  %v627 = vpack.c.b16 %v561, %v560
  %v628 = vpack.c.b16 %v563, %v562
  %v629 = vpack.c.b16 %v565, %v564
  %v630 = vpack.c.b16 %v567, %v566
  %v631 = vpack.c.b16 %v569, %v568
  %v632 = vpack.c.b16 %v571, %v570
  %v633 = vpack.c.b16 %v573, %v572
  %v634 = vpack.c.b16 %v575, %v574
  %v635 = vpack.c.b16 %v577, %v576
  %v636 = vpack.c.b16 %v579, %v578
  %v637 = vpack.c.b16 %v581, %v580
  %v638 = vpack.c.b16 %v583, %v582
  %v639 = vpack.c.b16 %v585, %v584
  %v640 = vpack.c.b16 %v587, %v586
  %v641 = vpack.c.b16 %v589, %v588
  %v642 = vpack.c.b16 %v591, %v590
  %v643 = vpack.c.b16 %v593, %v592
  %v644 = vpack.c.b16 %v595, %v594
  %v645 = vpack.c.b16 %v597, %v596
  %694 = vmatprep.subr.bf16.mxu0 0
  %695 = vmatpush1.bf16.msra.mxu0 %v598
  %696 = vmatprep.subr.bf16.mxu0 0
  %697 = vmatpush1.bf16.msra.mxu0 %v599
  %698 = vmatprep.subr.bf16.mxu0 0
  %699 = vmatpush1.bf16.msra.mxu0 %v600
  %700 = vmatprep.subr.bf16.mxu0 0
  %701 = vmatpush1.bf16.msra.mxu0 %v601
  %702 = vmatprep.subr.bf16.mxu0 0
  %703 = vmatpush1.bf16.msra.mxu0 %v602
  %704 = vmatprep.subr.bf16.mxu0 0
  %705 = vmatpush1.bf16.msra.mxu0 %v603
  %706 = vmatprep.subr.bf16.mxu0 0
  %707 = vmatpush1.bf16.msra.mxu0 %v604
  %708 = vmatprep.subr.bf16.mxu0 0
  %709 = vmatpush1.bf16.msra.mxu0 %v605
  %710 = vmatprep.subr.bf16.mxu0 0
  %711 = vmatpush1.bf16.msra.mxu0 %v606
  %712 = vmatprep.subr.bf16.mxu0 0
  %713 = vmatpush1.bf16.msra.mxu0 %v607
  %714 = vmatprep.subr.bf16.mxu0 0
  %715 = vmatpush1.bf16.msra.mxu0 %v608
  %716 = vmatprep.subr.bf16.mxu0 0
  %717 = vmatpush1.bf16.msra.mxu0 %v609
  %718 = vmatprep.subr.bf16.mxu0 0
  %719 = vmatpush1.bf16.msra.mxu0 %v610
  %720 = vmatprep.subr.bf16.mxu0 0
  %721 = vmatpush1.bf16.msra.mxu0 %v611
  %722 = vmatprep.subr.bf16.mxu0 0
  %723 = vmatpush1.bf16.msra.mxu0 %v612
  %724 = vmatprep.subr.bf16.mxu0 0
  %725 = vmatpush1.bf16.msra.mxu0 %v613
  %726 = vmatprep.mubr.bf16.mxu0 %v311
  %727 = vmatmul.mubr.bf16.gmra.mrb[0].mxu0 %v310
  %v728 = vpop.f32.mrb[0].mxu0
  %v729 = vadd.f32 %v164, %v728
  %v730 = vpop.f32.mrb[0].mxu0
  %v731 = vpop.f32.mrb[0].mxu0
  %v732 = vadd.f32 %v164, %v731
  %v733 = vpop.f32.mrb[0].mxu0
  %734 = vmatprep.mubr.bf16.mxu0 %v317
  %735 = vmatmul.mubr.bf16.gmra.mrb[0].mxu0 %v316
  %v736 = vpop.f32.mrb[0].mxu0
  %v737 = vadd.f32 %v164, %v736
  %v738 = vpop.f32.mrb[0].mxu0
  %v739 = vpop.f32.mrb[0].mxu0
  %v740 = vadd.f32 %v164, %v739
  %v741 = vpop.f32.mrb[0].mxu0
  %742 = vmatprep.mubr.bf16.mxu0 %v323
  %743 = vmatmul.mubr.bf16.gmra.mrb[0].mxu0 %v322
  %v744 = vpop.f32.mrb[0].mxu0
  %v745 = vadd.f32 %v164, %v744
  %v746 = vpop.f32.mrb[0].mxu0
  %v747 = vpop.f32.mrb[0].mxu0
  %v748 = vadd.f32 %v164, %v747
  %v749 = vpop.f32.mrb[0].mxu0
  %750 = vmatprep.mubr.bf16.mxu0 %v329
  %751 = vmatmul.mubr.bf16.gmra.mrb[0].mxu0 %v328
  %v752 = vpop.f32.mrb[0].mxu0
  %v753 = vadd.f32 %v164, %v752
  %v754 = vpop.f32.mrb[0].mxu0
  %v755 = vpop.f32.mrb[0].mxu0
  %v756 = vadd.f32 %v164, %v755
  %v757 = vpop.f32.mrb[0].mxu0
  %758 = vmatprep.mubr.bf16.mxu0 %v335
  %759 = vmatmul.mubr.bf16.gmra.mrb[0].mxu0 %v334
  %v760 = vpop.f32.mrb[0].mxu0
  %v761 = vadd.f32 %v164, %v760
  %v762 = vpop.f32.mrb[0].mxu0
  %v763 = vpop.f32.mrb[0].mxu0
  %v764 = vadd.f32 %v164, %v763
  %v765 = vpop.f32.mrb[0].mxu0
  %766 = vmatprep.mubr.bf16.mxu0 %v341
  %767 = vmatmul.mubr.bf16.gmra.mrb[0].mxu0 %v340
  %v768 = vpop.f32.mrb[0].mxu0
  %v769 = vadd.f32 %v164, %v768
  %v770 = vpop.f32.mrb[0].mxu0
  %v771 = vpop.f32.mrb[0].mxu0
  %v772 = vadd.f32 %v164, %v771
  %v773 = vpop.f32.mrb[0].mxu0
  %774 = vmatprep.mubr.bf16.mxu0 %v347
  %775 = vmatmul.mubr.bf16.gmra.mrb[0].mxu0 %v346
  %v776 = vpop.f32.mrb[0].mxu0
  %v777 = vadd.f32 %v164, %v776
  %v778 = vpop.f32.mrb[0].mxu0
  %v779 = vpop.f32.mrb[0].mxu0
  %v780 = vadd.f32 %v164, %v779
  %v781 = vpop.f32.mrb[0].mxu0
  %782 = vmatprep.mubr.bf16.mxu0 %v353
  %783 = vmatmul.mubr.bf16.gmra.mrb[0].mxu0 %v352
  %v784 = vpop.f32.mrb[0].mxu0
  %v785 = vadd.f32 %v164, %v784
  %v786 = vpop.f32.mrb[0].mxu0
  %v787 = vpop.f32.mrb[0].mxu0
  %v788 = vadd.f32 %v164, %v787
  %v789 = vpop.f32.mrb[0].mxu0
  %790 = vdwg.mxu0
  %791 = vmatprep.subr.bf16.mxu0 0
  %792 = vmatpush1.bf16.msra.mxu0 %v614
  %793 = vmatprep.subr.bf16.mxu0 0
  %794 = vmatpush1.bf16.msra.mxu0 %v615
  %795 = vmatprep.subr.bf16.mxu0 0
  %796 = vmatpush1.bf16.msra.mxu0 %v616
  %797 = vmatprep.subr.bf16.mxu0 0
  %798 = vmatpush1.bf16.msra.mxu0 %v617
  %799 = vmatprep.subr.bf16.mxu0 0
  %800 = vmatpush1.bf16.msra.mxu0 %v618
  %801 = vmatprep.subr.bf16.mxu0 0
  %802 = vmatpush1.bf16.msra.mxu0 %v619
  %803 = vmatprep.subr.bf16.mxu0 0
  %804 = vmatpush1.bf16.msra.mxu0 %v620
  %805 = vmatprep.subr.bf16.mxu0 0
  %806 = vmatpush1.bf16.msra.mxu0 %v621
  %807 = vmatprep.subr.bf16.mxu0 0
  %808 = vmatpush1.bf16.msra.mxu0 %v622
  %809 = vmatprep.subr.bf16.mxu0 0
  %810 = vmatpush1.bf16.msra.mxu0 %v623
  %811 = vmatprep.subr.bf16.mxu0 0
  %812 = vmatpush1.bf16.msra.mxu0 %v624
  %813 = vmatprep.subr.bf16.mxu0 0
  %814 = vmatpush1.bf16.msra.mxu0 %v625
  %815 = vmatprep.subr.bf16.mxu0 0
  %816 = vmatpush1.bf16.msra.mxu0 %v626
  %817 = vmatprep.subr.bf16.mxu0 0
  %818 = vmatpush1.bf16.msra.mxu0 %v627
  %819 = vmatprep.subr.bf16.mxu0 0
  %820 = vmatpush1.bf16.msra.mxu0 %v628
  %821 = vmatprep.subr.bf16.mxu0 0
  %822 = vmatpush1.bf16.msra.mxu0 %v629
  %823 = vmatprep.mubr.bf16.mxu0 %v313
  %824 = vmatmul.mubr.bf16.gmra.mrb[0].mxu0 %v312
  %v825 = vpop.f32.mrb[0].mxu0
  %v826 = vadd.f32 %v729, %v825
  %v827 = vpop.f32.mrb[0].mxu0
  %v828 = vpop.f32.mrb[0].mxu0
  %v829 = vadd.f32 %v732, %v828
  %v830 = vpop.f32.mrb[0].mxu0
  %831 = vmatprep.mubr.bf16.mxu0 %v319
  %832 = vmatmul.mubr.bf16.gmra.mrb[0].mxu0 %v318
  %v833 = vpop.f32.mrb[0].mxu0
  %v834 = vadd.f32 %v737, %v833
  %v835 = vpop.f32.mrb[0].mxu0
  %v836 = vpop.f32.mrb[0].mxu0
  %v837 = vadd.f32 %v740, %v836
  %v838 = vpop.f32.mrb[0].mxu0
  %839 = vmatprep.mubr.bf16.mxu0 %v325
  %840 = vmatmul.mubr.bf16.gmra.mrb[0].mxu0 %v324
  %v841 = vpop.f32.mrb[0].mxu0
  %v842 = vadd.f32 %v745, %v841
  %v843 = vpop.f32.mrb[0].mxu0
  %v844 = vpop.f32.mrb[0].mxu0
  %v845 = vadd.f32 %v748, %v844
  %v846 = vpop.f32.mrb[0].mxu0
  %847 = vmatprep.mubr.bf16.mxu0 %v331
  %848 = vmatmul.mubr.bf16.gmra.mrb[0].mxu0 %v330
  %v849 = vpop.f32.mrb[0].mxu0
  %v850 = vadd.f32 %v753, %v849
  %v851 = vpop.f32.mrb[0].mxu0
  %v852 = vpop.f32.mrb[0].mxu0
  %v853 = vadd.f32 %v756, %v852
  %v854 = vpop.f32.mrb[0].mxu0
  %855 = vmatprep.mubr.bf16.mxu0 %v337
  %856 = vmatmul.mubr.bf16.gmra.mrb[0].mxu0 %v336
  %v857 = vpop.f32.mrb[0].mxu0
  %v858 = vadd.f32 %v761, %v857
  %v859 = vpop.f32.mrb[0].mxu0
  %v860 = vpop.f32.mrb[0].mxu0
  %v861 = vadd.f32 %v764, %v860
  %v862 = vpop.f32.mrb[0].mxu0
  %863 = vmatprep.mubr.bf16.mxu0 %v343
  %864 = vmatmul.mubr.bf16.gmra.mrb[0].mxu0 %v342
  %v865 = vpop.f32.mrb[0].mxu0
  %v866 = vadd.f32 %v769, %v865
  %v867 = vpop.f32.mrb[0].mxu0
  %v868 = vpop.f32.mrb[0].mxu0
  %v869 = vadd.f32 %v772, %v868
  %v870 = vpop.f32.mrb[0].mxu0
  %871 = vmatprep.mubr.bf16.mxu0 %v349
  %872 = vmatmul.mubr.bf16.gmra.mrb[0].mxu0 %v348
  %v873 = vpop.f32.mrb[0].mxu0
  %v874 = vadd.f32 %v777, %v873
  %v875 = vpop.f32.mrb[0].mxu0
  %v876 = vpop.f32.mrb[0].mxu0
  %v877 = vadd.f32 %v780, %v876
  %v878 = vpop.f32.mrb[0].mxu0
  %879 = vmatprep.mubr.bf16.mxu0 %v355
  %880 = vmatmul.mubr.bf16.gmra.mrb[0].mxu0 %v354
  %v881 = vpop.f32.mrb[0].mxu0
  %v882 = vadd.f32 %v785, %v881
  %v883 = vpop.f32.mrb[0].mxu0
  %v884 = vpop.f32.mrb[0].mxu0
  %v885 = vadd.f32 %v788, %v884
  %v886 = vpop.f32.mrb[0].mxu0
  %887 = vdwg.mxu0
  %888 = vmatprep.subr.bf16.mxu0 0
  %889 = vmatpush1.bf16.msra.mxu0 %v630
  %890 = vmatprep.subr.bf16.mxu0 0
  %891 = vmatpush1.bf16.msra.mxu0 %v631
  %892 = vmatprep.subr.bf16.mxu0 0
  %893 = vmatpush1.bf16.msra.mxu0 %v632
  %894 = vmatprep.subr.bf16.mxu0 0
  %895 = vmatpush1.bf16.msra.mxu0 %v633
  %896 = vmatprep.subr.bf16.mxu0 0
  %897 = vmatpush1.bf16.msra.mxu0 %v634
  %898 = vmatprep.subr.bf16.mxu0 0
  %899 = vmatpush1.bf16.msra.mxu0 %v635
  %900 = vmatprep.subr.bf16.mxu0 0
  %901 = vmatpush1.bf16.msra.mxu0 %v636
  %902 = vmatprep.subr.bf16.mxu0 0
  %903 = vmatpush1.bf16.msra.mxu0 %v637
  %904 = vmatprep.subr.bf16.mxu0 0
  %905 = vmatpush1.bf16.msra.mxu0 %v638
  %906 = vmatprep.subr.bf16.mxu0 0
  %907 = vmatpush1.bf16.msra.mxu0 %v639
  %908 = vmatprep.subr.bf16.mxu0 0
  %909 = vmatpush1.bf16.msra.mxu0 %v640
  %910 = vmatprep.subr.bf16.mxu0 0
  %911 = vmatpush1.bf16.msra.mxu0 %v641
  %912 = vmatprep.subr.bf16.mxu0 0
  %913 = vmatpush1.bf16.msra.mxu0 %v642
  %914 = vmatprep.subr.bf16.mxu0 0
  %915 = vmatpush1.bf16.msra.mxu0 %v643
  %916 = vmatprep.subr.bf16.mxu0 0
  %917 = vmatpush1.bf16.msra.mxu0 %v644
  %918 = vmatprep.subr.bf16.mxu0 0
  %919 = vmatpush1.bf16.msra.mxu0 %v645
  %920 = vmatprep.mubr.bf16.mxu0 %v315
  %921 = vmatmul.mubr.bf16.gmra.mrb[0].mxu0 %v314
  %v922 = vpop.f32.mrb[0].mxu0
  %v923 = vadd.f32 %v826, %v922
  %v924 = vpop.f32.mrb[0].mxu0
  %v925 = vpop.f32.mrb[0].mxu0
  %v926 = vadd.f32 %v829, %v925
  %v927 = vpop.f32.mrb[0].mxu0
  %928 = vmatprep.mubr.bf16.mxu0 %v321
  %929 = vmatmul.mubr.bf16.gmra.mrb[0].mxu0 %v320
  %v930 = vpop.f32.mrb[0].mxu0
  %v931 = vadd.f32 %v834, %v930
  %v932 = vpop.f32.mrb[0].mxu0
  %v933 = vpop.f32.mrb[0].mxu0
  %v934 = vadd.f32 %v837, %v933
  %v935 = vpop.f32.mrb[0].mxu0
  %936 = vmatprep.mubr.bf16.mxu0 %v327
  %937 = vmatmul.mubr.bf16.gmra.mrb[0].mxu0 %v326
  %v938 = vpop.f32.mrb[0].mxu0
  %v939 = vadd.f32 %v842, %v938
  %v940 = vpop.f32.mrb[0].mxu0
  %v941 = vpop.f32.mrb[0].mxu0
  %v942 = vadd.f32 %v845, %v941
  %v943 = vpop.f32.mrb[0].mxu0
  %944 = vmatprep.mubr.bf16.mxu0 %v333
  %945 = vmatmul.mubr.bf16.gmra.mrb[0].mxu0 %v332
  %v946 = vpop.f32.mrb[0].mxu0
  %v947 = vadd.f32 %v850, %v946
  %v948 = vpop.f32.mrb[0].mxu0
  %v949 = vpop.f32.mrb[0].mxu0
  %v950 = vadd.f32 %v853, %v949
  %v951 = vpop.f32.mrb[0].mxu0
  %952 = vmatprep.mubr.bf16.mxu0 %v339
  %953 = vmatmul.mubr.bf16.gmra.mrb[0].mxu0 %v338
  %v954 = vpop.f32.mrb[0].mxu0
  %v955 = vadd.f32 %v858, %v954
  %v956 = vpop.f32.mrb[0].mxu0
  %v957 = vpop.f32.mrb[0].mxu0
  %v958 = vadd.f32 %v861, %v957
  %v959 = vpop.f32.mrb[0].mxu0
  %960 = vmatprep.mubr.bf16.mxu0 %v345
  %961 = vmatmul.mubr.bf16.gmra.mrb[0].mxu0 %v344
  %v962 = vpop.f32.mrb[0].mxu0
  %v963 = vadd.f32 %v866, %v962
  %v964 = vpop.f32.mrb[0].mxu0
  %v965 = vpop.f32.mrb[0].mxu0
  %v966 = vadd.f32 %v869, %v965
  %v967 = vpop.f32.mrb[0].mxu0
  %968 = vmatprep.mubr.bf16.mxu0 %v351
  %969 = vmatmul.mubr.bf16.gmra.mrb[0].mxu0 %v350
  %v970 = vpop.f32.mrb[0].mxu0
  %v971 = vadd.f32 %v874, %v970
  %v972 = vpop.f32.mrb[0].mxu0
  %v973 = vpop.f32.mrb[0].mxu0
  %v974 = vadd.f32 %v877, %v973
  %v975 = vpop.f32.mrb[0].mxu0
  %976 = vmatprep.mubr.bf16.mxu0 %v357
  %977 = vmatmul.mubr.bf16.gmra.mrb[0].mxu0 %v356
  %v978 = vpop.f32.mrb[0].mxu0
  %v979 = vadd.f32 %v882, %v978
  %v980 = vpop.f32.mrb[0].mxu0
  %v981 = vpop.f32.mrb[0].mxu0
  %v982 = vadd.f32 %v885, %v981
  %v983 = vpop.f32.mrb[0].mxu0
  %984 = vdwg.mxu0
  %985 = vst [vmem:[%s3] sm:$0xff] %v923
  %986 = vst [vmem:[%s3 + $0x8] sm:$0xff] %v926
  %987 = vst [vmem:[%s3 + $0x10] sm:$0xff] %v931
  %988 = vst [vmem:[%s3 + $0x18] sm:$0xff] %v934
  %989 = vst [vmem:[%s3 + $0x20] sm:$0xff] %v939
  %990 = vst [vmem:[%s3 + $0x28] sm:$0xff] %v942
  %991 = vst [vmem:[%s3 + $0x30] sm:$0xff] %v947
  %992 = vst [vmem:[%s3 + $0x38] sm:$0xff] %v950
  %993 = vst [vmem:[%s3 + $0x40] sm:$0xff] %v955
  %994 = vst [vmem:[%s3 + $0x48] sm:$0xff] %v958
  %995 = vst [vmem:[%s3 + $0x50] sm:$0xff] %v963
  %996 = vst [vmem:[%s3 + $0x58] sm:$0xff] %v966
  %997 = vst [vmem:[%s3 + $0x60] sm:$0xff] %v971
  %998 = vst [vmem:[%s3 + $0x68] sm:$0xff] %v974
  %999 = vst [vmem:[%s3 + $0x70] sm:$0xff] %v979
  %1000 = vst [vmem:[%s3 + $0x78] sm:$0xff] %v982
  // Predicated region
  $region14: #{patch_embed_forward.1} parent=0 // pred_check
    _
  $region15: #{patch_embed_forward.1} parent=0 // pred_check_branch
    %1002 = sbr.rel (0) target = $region17
  $region16: #{patch_embed_forward.1} parent=0 // pred_region
    _
  $region17: #{patch_embed_forward.1} parent=0 // pred_fallthru
    _
  // Predicated region
  $region18: #{patch_embed_forward.1} parent=0 // pred_check
    _
  $region19: #{patch_embed_forward.1} parent=0 // pred_check_branch
    %1004 = sbr.rel (0) target = $region21
  $region20: #{patch_embed_forward.1} parent=0 // pred_region
    _
  $region21: #{patch_embed_forward.1} parent=0 // pred_fallthru
    _

</llo_original>
